<compile_context>
chip_gen: v5e
topology: v5e:2x2
jax: 0.10.0
libtpu: 0.0.40
codegen_flags: <defaults>
</compile_context>

<pallas_src>
import functools

import jax
import jax.numpy as jnp
from jax import lax
from jax.experimental import pallas as pl
from jax.experimental.pallas import tpu as pltpu

_LANES = 128
_SUBLANES = 8


def _round_down(v, m):
    return (v // m) * m


def _sublane_multiple(dtype):
    # Minimum second-to-last tile dim: f32 -> 8, bf16/f16 -> 16, int8/fp8 -> 32.
    return _SUBLANES * max(1, 4 // dtype.itemsize)


def _bce_with_logits_f32(x, t):
    # torch.nn.functional.binary_cross_entropy_with_logits (stable form):
    #   loss = max(x, 0) - x*t + log1p(exp(-|x|))
    x = x.astype(jnp.float32)
    t = t.astype(jnp.float32)
    return jnp.maximum(x, 0.0) - x * t + jnp.log1p(jnp.exp(-jnp.abs(x)))


def _bce_sum_kernel(x_ref, t_ref, out_ref, *, steps, block_rows, valid_rows, need_mask):
    """Sums BCE-with-logits over lane-dense tiles into an (8,128) accumulator."""
    i = pl.program_id(1)

    @pl.when(i == 0)
    def _():
        out_ref[...] = jnp.zeros_like(out_ref)

    loss = _bce_with_logits_f32(x_ref[...], t_ref[...])

    if need_mask:
        # Rows past the un-padded input are unspecified (partial-block DMA);
        # `where` selects 0.0 there so NaN/Inf garbage cannot leak into the sum.
        base_row = (pl.program_id(0) * steps + i) * block_rows
        row_in_block = lax.broadcasted_iota(jnp.int32, loss.shape, 0)
        loss = jnp.where(row_in_block < (valid_rows - base_row), loss, 0.0)

    # (block_rows,128) -> (block_rows//8, 8, 128), reduce leading axis: pure
    # VPU adds in vreg layout, no cross-lane traffic.  out_ref's BlockSpec
    # returns the same block for every i, so it stays VMEM-resident across
    # the reduction axis and only hits HBM once per core.
    out_ref[...] += loss.reshape(-1, _SUBLANES, _LANES).sum(axis=0)


def _chip_config():
    """Generation-aware split / tile-size / VMEM-limit selection."""
    try:
        kind = jax.devices()[0].device_kind.lower()
    except Exception:
        kind = ""
    if "v7" in kind:
        # v7x: 2 TensorCores/chip, 64 MiB VMEM per TC -> shard the leading
        # grid axis across both cores, keep the pipeline footprint small.
        return dict(
            nsplit=2,
            semantics=(pltpu.CORE_PARALLEL, pltpu.ARBITRARY),
            step_bytes=4 * 1024 * 1024,   # combined input bytes per grid step (per core)
            max_rows=8192,
            vmem_limit=32 * 1024 * 1024,
        )
    # v5e / v6e: single TensorCore, 128 MiB physical VMEM -> bigger tiles to
    # amortize the ~0.35 us/step overhead; no split axis (it would only be a
    # serial loop doubling the fixed overhead).
    return dict(
        nsplit=1,
        semantics=("arbitrary", "arbitrary"),
        step_bytes=8 * 1024 * 1024,
        max_rows=8192,
        vmem_limit=64 * 1024 * 1024,
    )


@jax.jit
def basic_loss(pred_logits, target):
    """BasicLoss.forward with integrated_sigmoid=True: BCE-with-logits, reduction='sum'."""
    x = pred_logits.reshape(-1)
    t = target.reshape(-1)
    n = x.shape[0]

    row_mult = max(_sublane_multiple(x.dtype), _sublane_multiple(t.dtype))
    bulk_rows = n // _LANES                       # full 128-element lane rows
    use_kernel = bulk_rows >= row_mult
    bulk_n = bulk_rows * _LANES if use_kernel else 0

    total = jnp.zeros((), jnp.float32)

    if use_kernel:
        cfg = _chip_config()
        # Prefix slice + reshape of the contiguous flat array: no padded copy
        # of the inputs is ever materialized.
        x2 = x[:bulk_n].reshape(bulk_rows, _LANES)
        t2 = t[:bulk_n].reshape(bulk_rows, _LANES)

        bytes_per_row = _LANES * (x.dtype.itemsize + t.dtype.itemsize)
        max_block_rows = max(
            row_mult,
            _round_down(min(cfg["step_bytes"] // bytes_per_row, cfg["max_rows"]), row_mult),
        )
        block_rows = min(max_block_rows, _round_down(bulk_rows, row_mult))

        total_blocks = pl.cdiv(bulk_rows, block_rows)
        nsplit = cfg["nsplit"] if total_blocks >= cfg["nsplit"] else 1
        steps = pl.cdiv(total_blocks, nsplit)
        grid_blocks = nsplit * steps
        need_mask = grid_blocks * block_rows != bulk_rows
        semantics = cfg["semantics"] if nsplit == cfg["nsplit"] else ("arbitrary", "arbitrary")

        def in_map(c, i):
            b = c * steps + i
            if grid_blocks > total_blocks:
                # Some (core, step) pairs fall past the last real block; clamp
                # the DMA source (their contribution is masked to zero).
                b = jnp.minimum(b, total_blocks - 1)
            return (b, 0)

        kernel = functools.partial(
            _bce_sum_kernel,
            steps=steps,
            block_rows=block_rows,
            valid_rows=bulk_rows,
            need_mask=need_mask,
        )

        partials = pl.pallas_call(
            kernel,
            out_shape=jax.ShapeDtypeStruct((nsplit * _SUBLANES, _LANES), jnp.float32),
            grid_spec=pltpu.PrefetchScalarGridSpec(
                num_scalar_prefetch=0,
                grid=(nsplit, steps),
                in_specs=[
                    pl.BlockSpec((block_rows, _LANES), in_map),
                    pl.BlockSpec((block_rows, _LANES), in_map),
                ],
                out_specs=pl.BlockSpec((_SUBLANES, _LANES), lambda c, i: (c, 0)),
            ),
            compiler_params=pltpu.CompilerParams(
                dimension_semantics=semantics,
                vmem_limit_bytes=cfg["vmem_limit"],
            ),
        )(x2, t2)
        total = total + jnp.sum(partials)

    # Tail (< 128 elements, or the whole input when it is tiny): trivial jnp path.
    if bulk_n < n:
        total = total + jnp.sum(_bce_with_logits_f32(x[bulk_n:], t[bulk_n:]))

    return total


def _reference_bce_sum(x, t):
    return jnp.sum(_bce_with_logits_f32(x, t))


if __name__ == "__main__":
    key = jax.random.PRNGKey(0)
    k1, k2, k3, k4, k5, k6 = jax.random.split(key, 6)

    # Case 1: lane-aligned f32 input -> kernel path, no masking needed.
    pred1 = jax.random.normal(k1, (16, 256), dtype=jnp.float32) * 2.0
    targ1 = jax.random.bernoulli(k2, p=0.3, shape=(16, 256)).astype(jnp.float32)
    loss1 = jax.block_until_ready(basic_loss(pred1, targ1))
    ref1 = _reference_bce_sum(pred1, targ1)
    assert jnp.allclose(loss1, ref1, rtol=1e-5, atol=1e-3), (loss1, ref1)

    # Case 2: odd-shaped bf16 input -> kernel path with a masked partial last
    # block plus a <128-element tail handled in the wrapper.
    shape2 = (5, 9, 67)  # 3015 elements
    pred2 = (jax.random.normal(k3, shape2, dtype=jnp.float32) * 2.0).astype(jnp.bfloat16)
    targ2 = jax.random.bernoulli(k4, p=0.5, shape=shape2).astype(jnp.bfloat16)
    loss2 = jax.block_until_ready(basic_loss(pred2, targ2))
    ref2 = _reference_bce_sum(pred2, targ2)
    assert jnp.allclose(loss2, ref2, rtol=1e-4, atol=1e-2), (loss2, ref2)

    # Case 3: tiny input (< 128 elements) -> pure wrapper path.
    pred3 = jax.random.normal(k5, (3, 5), dtype=jnp.float32)
    targ3 = jax.random.bernoulli(k6, p=0.5, shape=(3, 5)).astype(jnp.float32)
    loss3 = jax.block_until_ready(basic_loss(pred3, targ3))
    ref3 = _reference_bce_sum(pred3, targ3)
    assert jnp.allclose(loss3, ref3, rtol=1e-5, atol=1e-4), (loss3, ref3)

    print("KERNEL_OK")
</pallas_src>

<mosaic_0001>
module attributes {stable_mosaic.version = 11 : i64} {
  func.func @_bce_sum_kernel(%arg0: i32, %arg1: i32, %arg2: memref<32x128xf32, #tpu.memory_space<vmem>>, %arg3: memref<32x128xf32, #tpu.memory_space<vmem>>, %arg4: memref<8x128xf32, #tpu.memory_space<vmem>>) attributes {dimension_semantics = [#tpu.dimension_semantics<arbitrary>, #tpu.dimension_semantics<arbitrary>], iteration_bounds = array<i64: 1, 1>, scalar_prefetch = 0 : i64, scratch_operands = 0 : i64, tpu.core_type = #tpu.core_type<tc>, window_params = [{transform_indices = @transform_0, window_bounds = array<i64: 32, 128>}, {transform_indices = @transform_1, window_bounds = array<i64: 32, 128>}, {transform_indices = @transform_2, window_bounds = array<i64: 8, 128>}]} {
    %c0_i32 = arith.constant 0 : i32
    %0 = arith.cmpi eq, %arg1, %c0_i32 : i32
    %1 = arith.extui %0 : i1 to i32
    %c0_i32_0 = arith.constant 0 : i32
    %2 = arith.cmpi ne, %1, %c0_i32_0 : i32
    scf.if %2 {
      %cst_10 = arith.constant 0.000000e+00 : f32
      %20 = vector.broadcast %cst_10 : f32 to vector<8x128xf32>
      %c0_11 = arith.constant 0 : index
      %c0_12 = arith.constant 0 : index
      %21 = vector.load %arg4[%c0_11, %c0_12] : memref<8x128xf32, #tpu.memory_space<vmem>>, vector<8x128xf32>
      tpu.vector_store %arg4[%c0_11, %c0_12], %20 {strides = array<i32>} : memref<8x128xf32, #tpu.memory_space<vmem>>, vector<8x128xf32>,
    } else {
    }
    %c0 = arith.constant 0 : index
    %c0_1 = arith.constant 0 : index
    %3 = vector.load %arg2[%c0, %c0_1] : memref<32x128xf32, #tpu.memory_space<vmem>>, vector<32x128xf32>
    %c0_2 = arith.constant 0 : index
    %c0_3 = arith.constant 0 : index
    %4 = vector.load %arg3[%c0_2, %c0_3] : memref<32x128xf32, #tpu.memory_space<vmem>>, vector<32x128xf32>
    %cst = arith.constant 0.000000e+00 : f32
    %5 = vector.broadcast %cst : f32 to vector<32x128xf32>
    %6 = arith.maximumf %3, %5 : vector<32x128xf32>
    %7 = arith.mulf %3, %4 : vector<32x128xf32>
    %8 = arith.subf %6, %7 : vector<32x128xf32>
    %9 = math.absf %3 : vector<32x128xf32>
    %cst_4 = arith.constant 0.000000e+00 : f32
    %10 = vector.broadcast %cst_4 : f32 to vector<32x128xf32>
    %11 = arith.subf %10, %9 : vector<32x128xf32>
    %12 = math.exp %11 : vector<32x128xf32>
    %13 = math.log1p %12 : vector<32x128xf32>
    %14 = arith.addf %8, %13 : vector<32x128xf32>
    %c0_5 = arith.constant 0 : index
    %c0_6 = arith.constant 0 : index
    %15 = vector.load %arg4[%c0_5, %c0_6] : memref<8x128xf32, #tpu.memory_space<vmem>>, vector<8x128xf32>
    %16 = vector.shape_cast %14 : vector<32x128xf32> to vector<4x8x128xf32>
    %cst_7 = arith.constant dense<0.000000e+00> : vector<8x128xf32>
    %17 = vector.multi_reduction <add>, %16, %cst_7 [0] : vector<4x8x128xf32> to vector<8x128xf32>
    %18 = arith.addf %15, %17 : vector<8x128xf32>
    %c0_8 = arith.constant 0 : index
    %c0_9 = arith.constant 0 : index
    %19 = vector.load %arg4[%c0_8, %c0_9] : memref<8x128xf32, #tpu.memory_space<vmem>>, vector<8x128xf32>
    tpu.vector_store %arg4[%c0_8, %c0_9], %18 {strides = array<i32>} : memref<8x128xf32, #tpu.memory_space<vmem>>, vector<8x128xf32>,
    return
  }
  func.func @transform_0(%arg0: i32, %arg1: i32) -> (i32, i32) {
    %c1_i32 = arith.constant 1 : i32
    %0 = arith.muli %arg0, %c1_i32 : i32
    %1 = arith.addi %0, %arg1 : i32
    %c0_i32 = arith.constant 0 : i32
    %c0_i32_0 = arith.constant 0 : i32
    return %1, %c0_i32 : i32, i32
  }
  func.func @transform_1(%arg0: i32, %arg1: i32) -> (i32, i32) {
    %c1_i32 = arith.constant 1 : i32
    %0 = arith.muli %arg0, %c1_i32 : i32
    %1 = arith.addi %0, %arg1 : i32
    %c0_i32 = arith.constant 0 : i32
    %c0_i32_0 = arith.constant 0 : i32
    return %1, %c0_i32 : i32, i32
  }
  func.func @transform_2(%arg0: i32, %arg1: i32) -> (i32, i32) {
    %c0_i32 = arith.constant 0 : i32
    %c0_i32_0 = arith.constant 0 : i32
    return %arg0, %c0_i32 : i32, i32
  }
}

</mosaic_0001>

<llo_original>
// kernel: basic_loss.1
$region0: #{basic_loss.1}
  #allocation0 [shape = 'u32[]', space=smem, size = 0x4, offset = 0x4, fixed_abs, tag = 'smem constant byte address 0x4 - core index']
  #allocation1 [shape = 'u32[72,128]{1,0:T(1,128)}', space=vmem, size = 0x9000, scoped, tag = 'internal scratch']
  %s0 = inlined_call_operand.vmem [shape: f32[32,128], index: 0, kind: input, shape index: {}]
  %s1 = inlined_call_operand.vmem [shape: f32[32,128], index: 1, kind: input, shape index: {}]
  %s2 = inlined_call_operand.vmem [shape: f32[8,128], index: 2, kind: output, shape index: {}]
  %s3 = sld [smem:[#allocation0]]
  $region22: #{basic_loss.1} parent=0
    _
  %s5 = ssub.s32 1, %s3
  %s6 = scalar_select 0, %s5, %s3
  // Predicated region
  $region2: #{basic_loss.1} parent=0 // pred_check
    _
  $region3: #{basic_loss.1} parent=0 // pred_check_branch
    %8 = sbr.rel (0) target = $region5
  $region4: #{basic_loss.1} parent=0 // pred_region
    %s9 = sadd.s32 0, 0
    %s10 = smul.u32 4, %s9
    %p11 = scmp.lt.s32.totalorder %s10, 3
    %s12 = scalar_select %p11, %s10, 3
    %s13 = smul.addr %s12, 8
    %s14 = scalar_lea.vmem %s0, %s13
    %s15 = sadd.s32 0, 0
    %s16 = smul.u32 4, %s15
  $region5: #{basic_loss.1} parent=0 // pred_fallthru
    _
  // Predicated region
  $region6: #{basic_loss.1} parent=0 // pred_check
    _
  $region7: #{basic_loss.1} parent=0 // pred_check_branch
    %18 = sbr.rel (0) target = $region9
  $region8: #{basic_loss.1} parent=0 // pred_region
    %s19 = sadd.s32 0, 0
    %s20 = smul.u32 4, %s19
    %p21 = scmp.lt.s32.totalorder %s20, 3
    %s22 = scalar_select %p21, %s20, 3
    %s23 = smul.addr %s22, 8
    %s24 = scalar_lea.vmem %s1, %s23
    %s25 = sadd.s32 0, 0
    %s26 = smul.u32 4, %s25
  $region9: #{basic_loss.1} parent=0 // pred_fallthru
    _
  %s27 = sadd.s32 0, 0
  %s28 = smul.u32 4, %s27
  %p29 = scmp.lt.s32.totalorder %s28, 3
  %s30 = scalar_select %p29, %s28, 3
  %s31 = smul.addr %s30, 8
  %s32 = scalar_lea.vmem %s0, %s31
  %s33 = sadd.s32 0, 0
  %s34 = smul.u32 4, %s33
  %p35 = scmp.lt.s32.totalorder %s34, 3
  %s36 = scalar_select %p35, %s34, 3
  %s37 = smul.addr %s36, 8
  %s38 = scalar_lea.vmem %s1, %s37
  %s39 = sadd.s32 0, 0
  %s40 = smul.u32 4, %s39
  %p41 = scmp.lt.s32.totalorder %s40, 3
  %s42 = scalar_select %p41, %s40, 3
  %s43 = smul.addr %s42, 8
  %s44 = scalar_lea.vmem %s0, %s43
  %s45 = sadd.s32 0, 0
  %s46 = smul.u32 4, %s45
  %s47 = sadd.s32 0, 0
  %s48 = smul.u32 4, %s47
  %p49 = scmp.lt.s32.totalorder %s48, 3
  %s50 = scalar_select %p49, %s48, 3
  %s51 = smul.addr %s50, 8
  %s52 = scalar_lea.vmem %s1, %s51
  %s53 = sadd.s32 0, 0
  %s54 = smul.u32 4, %s53
  %p55 = scmp.eq.s32.totalorder 0, 0
  // Predicated region
  $region10: #{basic_loss.1} parent=0 // pred_check
    %p56 = pneg %p55
  $region11: #{basic_loss.1} parent=0 // pred_check_branch
    %58 = sbr.rel (%p56) target = $region13
  $region12: #{basic_loss.1} parent=0 // pred_region
    %59 = vst [vmem:[%s2] sm:$0xff] 0.0
  $region13: #{basic_loss.1} parent=0 // pred_fallthru
    _
  %v60 = vld [vmem:[%s44] sm:$0xff]
  %v61 = vld [vmem:[%s44 + $0x8] sm:$0xff]
  %v62 = vld [vmem:[%s44 + $0x10] sm:$0xff]
  %v63 = vld [vmem:[%s44 + $0x18] sm:$0xff]
  %v64 = vld [vmem:[%s52] sm:$0xff]
  %v65 = vld [vmem:[%s52 + $0x8] sm:$0xff]
  %v66 = vld [vmem:[%s52 + $0x10] sm:$0xff]
  %v67 = vld [vmem:[%s52 + $0x18] sm:$0xff]
  %v68 = vmax.f32 %v60, 0.0
  %v69 = vmax.f32 %v61, 0.0
  %v70 = vmax.f32 %v62, 0.0
  %v71 = vmax.f32 %v63, 0.0
  %v72 = vmul.f32 %v60, %v64
  %v73 = vmul.f32 %v61, %v65
  %v74 = vmul.f32 %v62, %v66
  %v75 = vmul.f32 %v63, %v67
  %v76 = vsub.f32 %v68, %v72
  %v77 = vsub.f32 %v69, %v73
  %v78 = vsub.f32 %v70, %v74
  %v79 = vsub.f32 %v71, %v75
  %v80 = vand.u32 2147483647, %v60
  %v81 = vand.u32 2147483647, %v61
  %v82 = vand.u32 2147483647, %v62
  %v83 = vand.u32 2147483647, %v63
  %v84 = vsub.f32 0.0, %v80
  %v85 = vsub.f32 0.0, %v81
  %v86 = vsub.f32 0.0, %v82
  %v87 = vsub.f32 0.0, %v83
  %v88 = vmul.f32 %v84, 1.442695
  %v89 = vpow.pop %v88
  %v90 = vmul.f32 %v85, 1.442695
  %v91 = vpow.pop %v90
  %v92 = vmul.f32 %v86, 1.442695
  %v93 = vpow.pop %v92
  %v94 = vmul.f32 %v87, 1.442695
  %v95 = vpow.pop %v94
  %v96 = vadd.f32 %v89, 1.0
  %v97 = vlog2.pop %v96
  %v98 = vmul.f32 %v97, 0.6931472
  %v99 = vmul.f32 -0.5, %v89
  %v100 = vadd.f32 %v99, 1.0
  %v101 = vmul.f32 %v100, %v89
  %v102 = vand.u32 2147483647, %v89
  %vm103 = vcmp.lt.f32.partialorder %v102, 0.0004427343
  %v104 = vsel %vm103, %v101, %v98
  %v105 = vadd.f32 %v91, 1.0
  %v106 = vlog2.pop %v105
  %v107 = vmul.f32 %v106, 0.6931472
  %v108 = vmul.f32 -0.5, %v91
  %v109 = vadd.f32 %v108, 1.0
  %v110 = vmul.f32 %v109, %v91
  %v111 = vand.u32 2147483647, %v91
  %vm112 = vcmp.lt.f32.partialorder %v111, 0.0004427343
  %v113 = vsel %vm112, %v110, %v107
  %v114 = vadd.f32 %v93, 1.0
  %v115 = vlog2.pop %v114
  %v116 = vmul.f32 %v115, 0.6931472
  %v117 = vmul.f32 -0.5, %v93
  %v118 = vadd.f32 %v117, 1.0
  %v119 = vmul.f32 %v118, %v93
  %v120 = vand.u32 2147483647, %v93
  %vm121 = vcmp.lt.f32.partialorder %v120, 0.0004427343
  %v122 = vsel %vm121, %v119, %v116
  %v123 = vadd.f32 %v95, 1.0
  %v124 = vlog2.pop %v123
  %v125 = vmul.f32 %v124, 0.6931472
  %v126 = vmul.f32 -0.5, %v95
  %v127 = vadd.f32 %v126, 1.0
  %v128 = vmul.f32 %v127, %v95
  %v129 = vand.u32 2147483647, %v95
  %vm130 = vcmp.lt.f32.partialorder %v129, 0.0004427343
  %v131 = vsel %vm130, %v128, %v125
  %v132 = vadd.f32 %v76, %v104
  %v133 = vadd.f32 %v77, %v113
  %v134 = vadd.f32 %v78, %v122
  %v135 = vadd.f32 %v79, %v131
  %v136 = vld [vmem:[%s2] sm:$0xff]
  %v137 = vadd.f32 %v132, %v133
  %v138 = vadd.f32 %v137, %v134
  %v139 = vadd.f32 %v138, %v135
  %v140 = vadd.f32 %v136, %v139
  %141 = vst [vmem:[%s2] sm:$0xff] %v140
  // Predicated region
  $region14: #{basic_loss.1} parent=0 // pred_check
    _
  $region15: #{basic_loss.1} parent=0 // pred_check_branch
    %143 = sbr.rel (0) target = $region17
  $region16: #{basic_loss.1} parent=0 // pred_region
    _
  $region17: #{basic_loss.1} parent=0 // pred_fallthru
    _
  // Predicated region
  $region18: #{basic_loss.1} parent=0 // pred_check
    _
  $region19: #{basic_loss.1} parent=0 // pred_check_branch
    %145 = sbr.rel (0) target = $region21
  $region20: #{basic_loss.1} parent=0 // pred_region
    _
  $region21: #{basic_loss.1} parent=0 // pred_fallthru
    _

</llo_original>
